<compile_context>
chip_gen: v7x
topology: tpu7x:2x2x1
jax: 0.10.0
libtpu: 0.0.40
codegen_flags: <defaults>
</compile_context>

<pallas_src>
import functools

import jax
import jax.numpy as jnp
from jax.experimental import pallas as pl
from jax.experimental.pallas import tpu as pltpu

_LANE = 128      # TPU lane width     -> pad every feature axis to this
_SUBLANE = 8     # TPU sublane width  -> pad the pooled-graph axis to this


# --------------------------------------------------------------------------- kernel
def _gcn_net_kernel(x_ref, adj_ref, w1_ref, b1_ref, w2_ref, b2_ref, pmat_ref,
                    o_ref, *, num_classes):
    """Fused forward: conv1+ReLU -> conv2+ReLU -> global_mean_pool -> log_softmax."""
    adj = adj_ref[...]                                              # (N, N), self loops included

    # Symmetric GCN normalization D^{-1/2} (A+I) D^{-1/2}.
    # Row sums == col sums for the undirected graphs this model targets, which
    # matches PyG gcn_norm; deg==0 guard keeps padded/isolated rows NaN-free.
    # (For N much larger than 128, fold the scaling into the (N,F) operand
    #  instead of materializing norm_adj; at N=16 this form is cheaper.)
    deg_dst = jnp.sum(adj, axis=1, keepdims=True)                   # (N, 1)
    deg_src = jnp.sum(adj, axis=0, keepdims=True)                   # (1, N)
    dinv_dst = jnp.where(deg_dst > 0, jax.lax.rsqrt(deg_dst), 0.0)
    dinv_src = jnp.where(deg_src > 0, jax.lax.rsqrt(deg_src), 0.0)
    norm_adj = adj * dinv_dst * dinv_src                            # (N, N)

    # conv1 + ReLU.  F_IN == 1, so X @ W1 is a rank-1 VPU broadcast, not an
    # MXU matmul.  (F.dropout is identity in eval mode.)
    h = x_ref[...] * w1_ref[...]                                    # (N,1)*(1,128) -> (N,128)
    h = jnp.dot(norm_adj, h, preferred_element_type=jnp.float32) + b1_ref[...]
    h = jnp.maximum(h, 0.0)

    # conv2 + ReLU
    h = jnp.dot(h, w2_ref[...], preferred_element_type=jnp.float32)
    h = jnp.dot(norm_adj, h, preferred_element_type=jnp.float32) + b2_ref[...]
    h = jnp.maximum(h, 0.0)

    # global_mean_pool as a matmul with the normalized pooling matrix
    pooled = jnp.dot(pmat_ref[...], h, preferred_element_type=jnp.float32)  # (Gp, 128)

    # log_softmax over the real classes only (padded lanes masked out)
    lane = jax.lax.broadcasted_iota(jnp.int32, pooled.shape, dimension=1)
    valid = lane < num_classes
    logits = jnp.where(valid, pooled, -1e30)
    m = jnp.max(logits, axis=-1, keepdims=True)
    p = jnp.where(valid, jnp.exp(logits - m), 0.0)
    lse = m + jnp.log(jnp.sum(p, axis=-1, keepdims=True))
    o_ref[...] = logits - lse


# --------------------------------------------------------------------------- wrappers
def _pad_to(a, shape):
    return jnp.pad(a, [(0, t - s) for s, t in zip(a.shape, shape)])


def prepare_padded_inputs(params, pmat):
    """One-time (init-path) lane/sublane padding of parameters and pool matrix.

    Keeping this OUT of the jitted per-call forward removes 5 jnp.pad ops and
    ~140 KiB of per-call HBM traffic from an otherwise launch-bound kernel.
    """
    g, n = pmat.shape
    g_pad = max(_SUBLANE, ((g + _SUBLANE - 1) // _SUBLANE) * _SUBLANE)
    return {
        "w1": _pad_to(params["w1"], (1, _LANE)),                     # (1,16)  -> (1,128)
        "b1": _pad_to(params["b1"].reshape(1, -1), (1, _LANE)),      # (16,)   -> (1,128)
        "w2": _pad_to(params["w2"], (_LANE, _LANE)),                 # (16,2)  -> (128,128)
        "b2": _pad_to(params["b2"].reshape(1, -1), (1, _LANE)),      # (2,)    -> (1,128)
        "pmat": _pad_to(pmat, (g_pad, n)),                           # (G,N)   -> (Gp,N)
    }


def gcn_net_forward(x, adj, padded, *, num_classes, num_graphs):
    """Eval-mode forward of Net_191106 as a single fused pallas_call.

    `x` stays at its natural (N, 1) shape; `padded` comes from
    prepare_padded_inputs (hoisted, not recomputed per call).
    """
    kernel = functools.partial(_gcn_net_kernel, num_classes=num_classes)
    vmem = pl.BlockSpec(memory_space=pltpu.MemorySpace.VMEM)   # whole array, no grid
    out_p = pl.pallas_call(
        kernel,
        out_shape=jax.ShapeDtypeStruct((padded["pmat"].shape[0], _LANE), jnp.float32),
        in_specs=[vmem] * 7,
        out_specs=vmem,
    )(x, adj, padded["w1"], padded["b1"], padded["w2"], padded["b2"], padded["pmat"])

    # TODO(synk): F.dropout only acts when module.training=True; eval-mode identity
    #             here (a training path would need pltpu.prng_seed/prng_random_bits).
    # TODO(synk): for batched many-graph inference on v7x, add a leading batch grid
    #             axis with dimension_semantics=("parallel",) to use both TensorCores.
    return out_p[:num_graphs, :num_classes]


# --------------------------------------------------------------------------- main
if __name__ == "__main__":
    key = jax.random.PRNGKey(0)
    k_x, k_w1, k_b1, k_w2, k_b2 = jax.random.split(key, 5)

    # Graph: 16 nodes, 2 graphs of 8 nodes each, ring topology inside each graph.
    N, F_IN, HID, C, G = 16, 1, 16, 2, 2
    x = jax.random.normal(k_x, (N, F_IN), dtype=jnp.float32)

    src_list, dst_list = [], []
    for gi in range(G):
        base = gi * 8
        for i in range(8):
            a, b = base + i, base + (i + 1) % 8
            src_list += [a, b]
            dst_list += [b, a]
    edge_index = jnp.array([src_list, dst_list], dtype=jnp.int32)   # [2, 32]
    batch = jnp.array([0] * 8 + [1] * 8, dtype=jnp.int32)           # [16]

    # Dense adjacency (adj[dst, src] = 1) + self loops (GCNConv add_self_loops=True).
    adj = jnp.zeros((N, N), dtype=jnp.float32)
    adj = adj.at[edge_index[1], edge_index[0]].set(1.0)
    adj = adj.at[jnp.arange(N), jnp.arange(N)].set(1.0)

    # Mean-pool matrix: pmat[g, n] = 1/|graph g| if batch[n] == g else 0.
    onehot = (batch[None, :] == jnp.arange(G)[:, None]).astype(jnp.float32)
    pmat = onehot / jnp.sum(onehot, axis=1, keepdims=True)

    # Deterministic synthetic parameters (GCNConv(1,16) / GCNConv(16,2), bias=True).
    params = {
        "w1": 0.3 * jax.random.normal(k_w1, (F_IN, HID), dtype=jnp.float32),
        "b1": 0.1 * jax.random.normal(k_b1, (HID,), dtype=jnp.float32),
        "w2": 0.3 * jax.random.normal(k_w2, (HID, C), dtype=jnp.float32),
        "b2": 0.1 * jax.random.normal(k_b2, (C,), dtype=jnp.float32),
    }

    # Padding hoisted out of the per-call path (done once, outside jit).
    padded = jax.tree_util.tree_map(jax.block_until_ready,
                                    prepare_padded_inputs(params, pmat))

    fwd = jax.jit(functools.partial(gcn_net_forward, num_classes=C, num_graphs=G))
    out = jax.block_until_ready(fwd(x, adj, padded))

    assert out.shape == (G, C)
    assert bool(jnp.all(jnp.isfinite(out)))
    assert bool(jnp.allclose(jnp.sum(jnp.exp(out), axis=1), 1.0, atol=1e-4))

    # Pure-JAX reference of the same forward math for a correctness cross-check.
    def ref_forward(x, adj, pmat, params):
        deg = jnp.sum(adj, axis=1, keepdims=True)
        dinv = jnp.where(deg > 0, 1.0 / jnp.sqrt(deg), 0.0)
        na = adj * dinv * dinv.T
        h = jnp.maximum(na @ (x @ params["w1"]) + params["b1"], 0.0)
        h = jnp.maximum(na @ (h @ params["w2"]) + params["b2"], 0.0)
        return jax.nn.log_softmax(pmat @ h, axis=1)

    ref = ref_forward(x, adj, pmat, params)
    assert bool(jnp.allclose(out, ref, atol=1e-4, rtol=1e-4))
    print("KERNEL_OK")
</pallas_src>

<mosaic_0001>
module attributes {stable_mosaic.version = 11 : i64} {
  func.func @_gcn_net_kernel(%arg0: memref<16x1xf32, #tpu.memory_space<vmem>>, %arg1: memref<16x16xf32, #tpu.memory_space<vmem>>, %arg2: memref<1x128xf32, #tpu.memory_space<vmem>>, %arg3: memref<1x128xf32, #tpu.memory_space<vmem>>, %arg4: memref<128x128xf32, #tpu.memory_space<vmem>>, %arg5: memref<1x128xf32, #tpu.memory_space<vmem>>, %arg6: memref<8x16xf32, #tpu.memory_space<vmem>>, %arg7: memref<8x128xf32, #tpu.memory_space<vmem>>) attributes {dimension_semantics = [], scalar_prefetch = 0 : i64, scratch_operands = 0 : i64, tpu.core_type = #tpu.core_type<tc>} {
    %c0 = arith.constant 0 : index
    %c0_0 = arith.constant 0 : index
    %0 = vector.load %arg1[%c0, %c0_0] : memref<16x16xf32, #tpu.memory_space<vmem>>, vector<16x16xf32>
    %cst = arith.constant dense<0.000000e+00> : vector<16xf32>
    %1 = vector.multi_reduction <add>, %0, %cst [1] : vector<16x16xf32> to vector<16xf32>
    %2 = vector.shape_cast %1 : vector<16xf32> to vector<16x1xf32>
    %cst_1 = arith.constant dense<0.000000e+00> : vector<16xf32>
    %3 = vector.multi_reduction <add>, %0, %cst_1 [0] : vector<16x16xf32> to vector<16xf32>
    %4 = vector.shape_cast %3 : vector<16xf32> to vector<1x16xf32>
    %cst_2 = arith.constant 0.000000e+00 : f32
    %5 = vector.broadcast %cst_2 : f32 to vector<16x1xf32>
    %6 = arith.cmpf ogt, %2, %5 : vector<16x1xf32>
    %7 = math.rsqrt %2 : vector<16x1xf32>
    %cst_3 = arith.constant 0.000000e+00 : f32
    %8 = vector.broadcast %cst_3 : f32 to vector<16x1xf32>
    %9 = arith.select %6, %7, %8 : vector<16x1xi1>, vector<16x1xf32>
    %cst_4 = arith.constant 0.000000e+00 : f32
    %10 = vector.broadcast %cst_4 : f32 to vector<1x16xf32>
    %11 = arith.cmpf ogt, %4, %10 : vector<1x16xf32>
    %12 = math.rsqrt %4 : vector<1x16xf32>
    %cst_5 = arith.constant 0.000000e+00 : f32
    %13 = vector.broadcast %cst_5 : f32 to vector<1x16xf32>
    %14 = arith.select %11, %12, %13 : vector<1x16xi1>, vector<1x16xf32>
    %15 = vector.broadcast %9 : vector<16x1xf32> to vector<16x16xf32>
    %16 = arith.mulf %0, %15 : vector<16x16xf32>
    %17 = vector.broadcast %14 : vector<1x16xf32> to vector<16x16xf32>
    %18 = arith.mulf %16, %17 : vector<16x16xf32>
    %c0_6 = arith.constant 0 : index
    %c0_7 = arith.constant 0 : index
    %19 = vector.load %arg0[%c0_6, %c0_7] : memref<16x1xf32, #tpu.memory_space<vmem>>, vector<16x1xf32>
    %c0_8 = arith.constant 0 : index
    %c0_9 = arith.constant 0 : index
    %20 = vector.load %arg2[%c0_8, %c0_9] : memref<1x128xf32, #tpu.memory_space<vmem>>, vector<1x128xf32>
    %21 = vector.broadcast %19 : vector<16x1xf32> to vector<16x128xf32>
    %22 = vector.broadcast %20 : vector<1x128xf32> to vector<16x128xf32>
    %23 = arith.mulf %21, %22 : vector<16x128xf32>
    %cst_10 = arith.constant dense<0.000000e+00> : vector<16x128xf32>
    %24 = tpu.matmul %18, %23, %cst_10 {dimension_numbers = #tpu.dot_dimension_numbers<[1], [0], [0], [1], [0, 0, 1, 1], [], []>} : vector<16x16xf32>, vector<16x128xf32>, vector<16x128xf32> -> vector<16x128xf32>
    %c0_11 = arith.constant 0 : index
    %c0_12 = arith.constant 0 : index
    %25 = vector.load %arg3[%c0_11, %c0_12] : memref<1x128xf32, #tpu.memory_space<vmem>>, vector<1x128xf32>
    %26 = vector.broadcast %25 : vector<1x128xf32> to vector<16x128xf32>
    %27 = arith.addf %24, %26 : vector<16x128xf32>
    %cst_13 = arith.constant 0.000000e+00 : f32
    %28 = vector.broadcast %cst_13 : f32 to vector<16x128xf32>
    %29 = arith.maximumf %27, %28 : vector<16x128xf32>
    %c0_14 = arith.constant 0 : index
    %c0_15 = arith.constant 0 : index
    %30 = vector.load %arg4[%c0_14, %c0_15] : memref<128x128xf32, #tpu.memory_space<vmem>>, vector<128x128xf32>
    %cst_16 = arith.constant dense<0.000000e+00> : vector<16x128xf32>
    %31 = tpu.matmul %29, %30, %cst_16 {dimension_numbers = #tpu.dot_dimension_numbers<[1], [0], [0], [1], [0, 0, 1, 1], [], []>} : vector<16x128xf32>, vector<128x128xf32>, vector<16x128xf32> -> vector<16x128xf32>
    %cst_17 = arith.constant dense<0.000000e+00> : vector<16x128xf32>
    %32 = tpu.matmul %18, %31, %cst_17 {dimension_numbers = #tpu.dot_dimension_numbers<[1], [0], [0], [1], [0, 0, 1, 1], [], []>} : vector<16x16xf32>, vector<16x128xf32>, vector<16x128xf32> -> vector<16x128xf32>
    %c0_18 = arith.constant 0 : index
    %c0_19 = arith.constant 0 : index
    %33 = vector.load %arg5[%c0_18, %c0_19] : memref<1x128xf32, #tpu.memory_space<vmem>>, vector<1x128xf32>
    %34 = vector.broadcast %33 : vector<1x128xf32> to vector<16x128xf32>
    %35 = arith.addf %32, %34 : vector<16x128xf32>
    %cst_20 = arith.constant 0.000000e+00 : f32
    %36 = vector.broadcast %cst_20 : f32 to vector<16x128xf32>
    %37 = arith.maximumf %35, %36 : vector<16x128xf32>
    %c0_21 = arith.constant 0 : index
    %c0_22 = arith.constant 0 : index
    %38 = vector.load %arg6[%c0_21, %c0_22] : memref<8x16xf32, #tpu.memory_space<vmem>>, vector<8x16xf32>
    %cst_23 = arith.constant dense<0.000000e+00> : vector<8x128xf32>
    %39 = tpu.matmul %38, %37, %cst_23 {dimension_numbers = #tpu.dot_dimension_numbers<[1], [0], [0], [1], [0, 0, 1, 1], [], []>} : vector<8x16xf32>, vector<16x128xf32>, vector<8x128xf32> -> vector<8x128xf32>
    %40 = tpu.iota {dimensions = array<i32: 1>} : vector<8x128xi32>
    %c2_i32 = arith.constant 2 : i32
    %41 = vector.broadcast %c2_i32 : i32 to vector<8x128xi32>
    %42 = arith.cmpi slt, %40, %41 : vector<8x128xi32>
    %cst_24 = arith.constant -1.000000e+30 : f32
    %43 = vector.broadcast %cst_24 : f32 to vector<8x128xf32>
    %44 = arith.select %42, %39, %43 : vector<8x128xi1>, vector<8x128xf32>
    %cst_25 = arith.constant dense<0xFF800000> : vector<8xf32>
    %45 = vector.multi_reduction <maximumf>, %44, %cst_25 [1] : vector<8x128xf32> to vector<8xf32>
    %46 = vector.shape_cast %45 : vector<8xf32> to vector<8x1xf32>
    %47 = vector.broadcast %46 : vector<8x1xf32> to vector<8x128xf32>
    %48 = arith.subf %44, %47 : vector<8x128xf32>
    %49 = math.exp %48 : vector<8x128xf32>
    %cst_26 = arith.constant 0.000000e+00 : f32
    %50 = vector.broadcast %cst_26 : f32 to vector<8x128xf32>
    %51 = arith.select %42, %49, %50 : vector<8x128xi1>, vector<8x128xf32>
    %cst_27 = arith.constant dense<0.000000e+00> : vector<8xf32>
    %52 = vector.multi_reduction <add>, %51, %cst_27 [1] : vector<8x128xf32> to vector<8xf32>
    %53 = vector.shape_cast %52 : vector<8xf32> to vector<8x1xf32>
    %54 = math.log %53 : vector<8x1xf32>
    %55 = arith.addf %46, %54 : vector<8x1xf32>
    %56 = vector.broadcast %55 : vector<8x1xf32> to vector<8x128xf32>
    %57 = arith.subf %44, %56 : vector<8x128xf32>
    %c0_28 = arith.constant 0 : index
    %c0_29 = arith.constant 0 : index
    %58 = vector.load %arg7[%c0_28, %c0_29] : memref<8x128xf32, #tpu.memory_space<vmem>>, vector<8x128xf32>
    tpu.vector_store %arg7[%c0_28, %c0_29], %57 {strides = array<i32>} : memref<8x128xf32, #tpu.memory_space<vmem>>, vector<8x128xf32>,
    return
  }
}

</mosaic_0001>

<llo_original>
// kernel: gcn_net_forward.1
$region0: #{gcn_net_forward.1}
  #allocation0 [shape = 'u32[]', space=smem, size = 0x4, offset = 0x4, fixed_abs, tag = 'smem constant byte address 0x4 - core index']
  #allocation1 [shape = 'u32[144,128]{1,0:T(1,128)}', space=vmem, size = 0x12000, scoped, tag = 'internal scratch']
  %s0 = inlined_call_operand.vmem [shape: f32[16,1], index: 0, kind: input, shape index: {}]
  %s1 = inlined_call_operand.vmem [shape: f32[16,16], index: 1, kind: input, shape index: {}]
  %s2 = inlined_call_operand.vmem [shape: f32[1,128], index: 2, kind: input, shape index: {}]
  %s3 = inlined_call_operand.hbm [shape: f32[1,128], index: 3, kind: input, shape index: {}]
  %s4 = inlined_call_operand.hbm [shape: f32[128,128], index: 4, kind: input, shape index: {}]
  %s5 = inlined_call_operand.vmem [shape: f32[1,128], index: 5, kind: input, shape index: {}]
  %s6 = inlined_call_operand.vmem [shape: f32[8,16], index: 6, kind: input, shape index: {}]
  %s7 = inlined_call_operand.vmem [shape: f32[8,128], index: 7, kind: output, shape index: {}]
  %s8 = sld [smem:[#allocation0]]
  $region46: #{gcn_net_forward.1} parent=0
    _
  %s10 = ssub.s32 1, %s8
  %s11 = scalar_select 0, %s10, %s8
  $region1: #{gcn_net_forward.1} parent=0
    #allocation2 [shape = 'u8[512]{0}', space=vmem, size = 0x400, scoped, tag = 'input window, operand 3, single buffered']
    #allocation3 [shape = 's32[1]{0}', space=sflag, size = 0x4, scoped, tag = 'scoped memory for gcn_net_forward.1']
    #allocation4 [shape = 'u8[65536]{0}', space=vmem, size = 0x10000, scoped, tag = 'input window, operand 4, single buffered']
    #allocation5 [shape = 's32[1]{0}', space=sflag, size = 0x4, scoped, tag = 'scoped memory for gcn_net_forward.1']
    %12 = vsyncpa [#allocation3], 0
    %13 = vsyncpa [#allocation5], 0
    // Predicated region
    $region2: #{gcn_net_forward.1} parent=1 // pred_check
      _
    $region3: #{gcn_net_forward.1} parent=1 // pred_check_branch
      %15 = sbr.rel (0) target = $region5
    $region4: #{gcn_net_forward.1} parent=1 // pred_region
      _
    $region5: #{gcn_net_forward.1} parent=1 // pred_fallthru
      _
    // Predicated region
    $region6: #{gcn_net_forward.1} parent=1 // pred_check
      _
    $region7: #{gcn_net_forward.1} parent=1 // pred_check_branch
      %17 = sbr.rel (0) target = $region9
    $region8: #{gcn_net_forward.1} parent=1 // pred_region
      _
    $region9: #{gcn_net_forward.1} parent=1 // pred_fallthru
      _
    // Predicated region
    $region10: #{gcn_net_forward.1} parent=1 // pred_check
      _
    $region11: #{gcn_net_forward.1} parent=1 // pred_check_branch
      %19 = sbr.rel (0) target = $region13
    $region12: #{gcn_net_forward.1} parent=1 // pred_region
      _
    $region13: #{gcn_net_forward.1} parent=1 // pred_fallthru
      _
    // Predicated region
    $region14: #{gcn_net_forward.1} parent=1 // pred_check
      _
    $region15: #{gcn_net_forward.1} parent=1 // pred_check_branch
      %21 = sbr.rel (0) target = $region17
    $region16: #{gcn_net_forward.1} parent=1 // pred_region
      %s23 = ssub.s32 16, 16
      %24 = vsyncadd [#allocation3], %s23
      %s26 = sshll.u32 [#allocation2], 4
      %s27 = int_to_ptr.vmem [resolvable:$true] %s26
      %29 = dma.hbm_to_vmem [thread:$0]  %s3, 16, %s27, [#allocation3]
    $region17: #{gcn_net_forward.1} parent=1 // pred_fallthru
      _
    // Predicated region
    $region18: #{gcn_net_forward.1} parent=1 // pred_check
      _
    $region19: #{gcn_net_forward.1} parent=1 // pred_check_branch
      %31 = sbr.rel (0) target = $region21
    $region20: #{gcn_net_forward.1} parent=1 // pred_region
      %s33 = ssub.s32 2048, 2048
      %34 = vsyncadd [#allocation5], %s33
      %s35 = sshll.u32 [#allocation4], 4
      %s36 = int_to_ptr.vmem [resolvable:$true] %s35
      %41 = dma.hbm_to_vmem [thread:$0]  %s4, 2048, %s36, [#allocation5], 128, 128, 8
    $region21: #{gcn_net_forward.1} parent=1 // pred_fallthru
      _
    // Predicated region
    $region22: #{gcn_net_forward.1} parent=1 // pred_check
      _
    $region23: #{gcn_net_forward.1} parent=1 // pred_check_branch
      %43 = sbr.rel (0) target = $region25
    $region24: #{gcn_net_forward.1} parent=1 // pred_region
      _
    $region25: #{gcn_net_forward.1} parent=1 // pred_fallthru
      _
    // Predicated region
    $region26: #{gcn_net_forward.1} parent=1 // pred_check
      _
    $region27: #{gcn_net_forward.1} parent=1 // pred_check_branch
      %45 = sbr.rel (0) target = $region29
    $region28: #{gcn_net_forward.1} parent=1 // pred_region
      _
    $region29: #{gcn_net_forward.1} parent=1 // pred_fallthru
      _
    // Predicated region
    $region30: #{gcn_net_forward.1} parent=1 // pred_check
      _
    $region31: #{gcn_net_forward.1} parent=1 // pred_check_branch
      %47 = sbr.rel (0) target = $region33
    $region32: #{gcn_net_forward.1} parent=1 // pred_region
      %48 = dma.done [#allocation3], 16
    $region33: #{gcn_net_forward.1} parent=1 // pred_fallthru
      _
    // Predicated region
    $region34: #{gcn_net_forward.1} parent=1 // pred_check
      _
    $region35: #{gcn_net_forward.1} parent=1 // pred_check_branch
      %50 = sbr.rel (0) target = $region37
    $region36: #{gcn_net_forward.1} parent=1 // pred_region
      %51 = dma.done [#allocation5], 2048
    $region37: #{gcn_net_forward.1} parent=1 // pred_fallthru
      _
    %v52 = vld [vmem:[%s1] sm:$0xff]
    %v53 = vld [vmem:[%s1 + $0x8] sm:$0xff]
    %vm54 = vcmask 130048
    %v55 = vsel %vm54, %v52, 0.0
    %56 = vadd.xlane.f32.xlu0 %v55
    %v57 = vpop.xlane.xlu0 %56
    %v58 = vsel %vm54, %v53, 0.0
    %59 = vadd.xlane.f32.xlu0 %v58
    %v60 = vpop.xlane.xlu0 %59
    %v61 = vadd.f32 %v55, %v58
    %v62 = vrot.slane %v61, 4
    %v63 = vadd.f32 %v61, %v62
    %v64 = vrot.slane %v63, 2
    %v65 = vadd.f32 %v63, %v64
    %v66 = vrot.slane %v65, 1
    %v67 = vadd.f32 %v65, %v66
    %vm68 = vcmp.gt.f32.partialorder %v57, 0.0
    %vm69 = vcmp.gt.f32.partialorder %v60, 0.0
    %v70 = vrsqrt.pop %v57
    %v71 = vrsqrt.pop %v60
    %v72 = vsel %vm68, %v70, 0.0
    %v73 = vsel %vm69, %v71, 0.0
    %vm74 = vcmp.gt.f32.partialorder %v67, 0.0
    %v75 = vrsqrt.pop %v67
    %v76 = vsel %vm74, %v75, 0.0
    %v77 = vmul.f32 %v52, %v72
    %v78 = vmul.f32 %v53, %v73
    %v79 = vmul.f32 %v77, %v76
    %v80 = vmul.f32 %v78, %v76
    %v81 = vld [vmem:[%s0] sm:$0xff]
    %v82 = vld [vmem:[%s0 + $0x8] sm:$0xff]
    %v83 = vld [vmem:[%s2] sm:$0x1]
    %85 = vset.pattern.permute.xlu0 0
    %86 = vperm.xlu0 %85, %v81
    %v87 = vpop.permute.xlu0 %86
    %90 = vset.pattern.permute.xlu0 0
    %91 = vperm.xlu0 %90, %v82
    %v92 = vpop.permute.xlu0 %91
    %v95 = vlaneseq
    %v96 = vshrl.u32 %v95, 7
    %v97 = vsub.s32 0, %v96
    %v98 = vrot.slane %v83, %v97
    %v100 = vmul.f32 %v87, %v98
    %v101 = vmul.f32 %v92, %v98
    %v102 = vld [vmem:[#allocation2] sm:$0x1]
    %v104 = vlaneseq
    %v105 = vshrl.u32 %v104, 7
    %v106 = vsub.s32 0, %v105
    %v107 = vrot.slane %v102, %v106
    %v110 = vsel %vm54, %v79, 0
    %v113 = vsel %vm54, %v80, 0
    %115 = vmatprep.subr.mxu0 0.0
    %116 = vmatpush1.msra.mxu0 %v100
    %117 = vmatprep.subr.mxu0 0.0
    %118 = vmatpush1.msra.mxu0 %v101
    %119 = vmatprep.subr.mxu0 0.0
    %120 = vmatpush1.msra.mxu0 0.0
    %121 = vmatprep.subr.mxu0 0.0
    %122 = vmatpush1.msra.mxu0 0.0
    %123 = vmatprep.subr.mxu0 0.0
    %124 = vmatpush1.msra.mxu0 0.0
    %125 = vmatprep.subr.mxu0 0.0
    %126 = vmatpush1.msra.mxu0 0.0
    %127 = vmatprep.subr.mxu0 0.0
    %128 = vmatpush1.msra.mxu0 0.0
    %129 = vmatprep.subr.mxu0 0.0
    %130 = vmatpush1.msra.mxu0 0.0
    %131 = vmatprep.subr.mxu0 0.0
    %132 = vmatpush1.msra.mxu0 0.0
    %133 = vmatprep.subr.mxu0 0.0
    %134 = vmatpush1.msra.mxu0 0.0
    %135 = vmatprep.subr.mxu0 0.0
    %136 = vmatpush1.msra.mxu0 0.0
    %137 = vmatprep.subr.mxu0 0.0
    %138 = vmatpush1.msra.mxu0 0.0
    %139 = vmatprep.subr.mxu0 0.0
    %140 = vmatpush1.msra.mxu0 0.0
    %141 = vmatprep.subr.mxu0 0.0
    %142 = vmatpush1.msra.mxu0 0.0
    %143 = vmatprep.subr.mxu0 0.0
    %144 = vmatpush1.msra.mxu0 0.0
    %145 = vmatprep.subr.mxu0 0.0
    %146 = vmatpush1.msra.mxu0 0.0
    %147 = vmatprep.subr.mxu0 0.0
    %148 = vmatpush1.msra.mxu0 0.0
    %149 = vmatprep.subr.mxu0 0.0
    %150 = vmatpush1.msra.mxu0 0.0
    %151 = vmatprep.subr.mxu0 0.0
    %152 = vmatpush1.msra.mxu0 0.0
    %153 = vmatprep.subr.mxu0 0.0
    %154 = vmatpush1.msra.mxu0 0.0
    %155 = vmatprep.subr.mxu0 0.0
    %156 = vmatpush1.msra.mxu0 0.0
    %157 = vmatprep.subr.mxu0 0.0
    %158 = vmatpush1.msra.mxu0 0.0
    %159 = vmatprep.subr.mxu0 0.0
    %160 = vmatpush1.msra.mxu0 0.0
    %161 = vmatprep.subr.mxu0 0.0
    %162 = vmatpush1.msra.mxu0 0.0
    %163 = vmatprep.subr.mxu0 0.0
    %164 = vmatpush1.msra.mxu0 0.0
    %165 = vmatprep.subr.mxu0 0.0
    %166 = vmatpush1.msra.mxu0 0.0
    %167 = vmatprep.subr.mxu0 0.0
    %168 = vmatpush1.msra.mxu0 0.0
    %169 = vmatprep.subr.mxu0 0.0
    %170 = vmatpush1.msra.mxu0 0.0
    %171 = vmatprep.subr.mxu0 0.0
    %172 = vmatpush1.msra.mxu0 0.0
    %173 = vmatprep.subr.mxu0 0.0
    %174 = vmatpush1.msra.mxu0 0.0
    %175 = vmatprep.subr.mxu0 0.0
    %176 = vmatpush1.msra.mxu0 0.0
    %177 = vmatprep.subr.mxu0 0.0
    %178 = vmatpush1.msra.mxu0 0.0
    %179 = vmatprep.mubr.f32.mxu0 0.0
    %180 = vmatmul.mubr.f32.gmra.mrb[0].mxu0 %v110
    %v181 = vpop.f32.mrb[0].mxu0
    %v182 = vadd.f32 %v107, %v181
    %v183 = vpop.f32.mrb[0].mxu0
    %184 = vmatprep.mubr.f32.mxu0 0.0
    %185 = vmatmul.mubr.f32.gmra.mrb[0].mxu0 %v113
    %v186 = vpop.f32.mrb[0].mxu0
    %v187 = vadd.f32 %v107, %v186
    %v188 = vpop.f32.mrb[0].mxu0
    %189 = vdwg.mxu0
    %v190 = vmax.f32 %v182, 0.0
    %v191 = vmax.f32 %v187, 0.0
    %v192 = vld [vmem:[#allocation4] sm:$0xff]
    %v193 = vld [vmem:[#allocation4 + $0x8] sm:$0xff]
    %v194 = vld [vmem:[#allocation4 + $0x10] sm:$0xff]
    %v195 = vld [vmem:[#allocation4 + $0x18] sm:$0xff]
    %v196 = vld [vmem:[#allocation4 + $0x20] sm:$0xff]
    %v197 = vld [vmem:[#allocation4 + $0x28] sm:$0xff]
    %v198 = vld [vmem:[#allocation4 + $0x30] sm:$0xff]
    %v199 = vld [vmem:[#allocation4 + $0x38] sm:$0xff]
    %v200 = vld [vmem:[#allocation4 + $0x40] sm:$0xff]
    %v201 = vld [vmem:[#allocation4 + $0x48] sm:$0xff]
    %v202 = vld [vmem:[#allocation4 + $0x50] sm:$0xff]
    %v203 = vld [vmem:[#allocation4 + $0x58] sm:$0xff]
    %v204 = vld [vmem:[#allocation4 + $0x60] sm:$0xff]
    %v205 = vld [vmem:[#allocation4 + $0x68] sm:$0xff]
    %v206 = vld [vmem:[#allocation4 + $0x70] sm:$0xff]
    %v207 = vld [vmem:[#allocation4 + $0x78] sm:$0xff]
    %208 = vmatprep.subr.mxu0 0.0
    %209 = vmatpush1.msra.mxu0 %v192
    %210 = vmatprep.subr.mxu0 0.0
    %211 = vmatpush1.msra.mxu0 %v193
    %212 = vmatprep.subr.mxu0 0.0
    %213 = vmatpush1.msra.mxu0 %v194
    %214 = vmatprep.subr.mxu0 0.0
    %215 = vmatpush1.msra.mxu0 %v195
    %216 = vmatprep.subr.mxu0 0.0
    %217 = vmatpush1.msra.mxu0 %v196
    %218 = vmatprep.subr.mxu0 0.0
    %219 = vmatpush1.msra.mxu0 %v197
    %220 = vmatprep.subr.mxu0 0.0
    %221 = vmatpush1.msra.mxu0 %v198
    %222 = vmatprep.subr.mxu0 0.0
    %223 = vmatpush1.msra.mxu0 %v199
    %224 = vmatprep.subr.mxu0 0.0
    %225 = vmatpush1.msra.mxu0 %v200
    %226 = vmatprep.subr.mxu0 0.0
    %227 = vmatpush1.msra.mxu0 %v201
    %228 = vmatprep.subr.mxu0 0.0
    %229 = vmatpush1.msra.mxu0 %v202
    %230 = vmatprep.subr.mxu0 0.0
    %231 = vmatpush1.msra.mxu0 %v203
    %232 = vmatprep.subr.mxu0 0.0
    %233 = vmatpush1.msra.mxu0 %v204
    %234 = vmatprep.subr.mxu0 0.0
    %235 = vmatpush1.msra.mxu0 %v205
    %236 = vmatprep.subr.mxu0 0.0
    %237 = vmatpush1.msra.mxu0 %v206
    %238 = vmatprep.subr.mxu0 0.0
    %239 = vmatpush1.msra.mxu0 %v207
    %240 = vmatprep.subr.mxu0 0.0
    %241 = vmatpush1.msra.mxu0 0.0
    %242 = vmatprep.subr.mxu0 0.0
    %243 = vmatpush1.msra.mxu0 0.0
    %244 = vmatprep.subr.mxu0 0.0
    %245 = vmatpush1.msra.mxu0 0.0
    %246 = vmatprep.subr.mxu0 0.0
    %247 = vmatpush1.msra.mxu0 0.0
    %248 = vmatprep.subr.mxu0 0.0
    %249 = vmatpush1.msra.mxu0 0.0
    %250 = vmatprep.subr.mxu0 0.0
    %251 = vmatpush1.msra.mxu0 0.0
    %252 = vmatprep.subr.mxu0 0.0
    %253 = vmatpush1.msra.mxu0 0.0
    %254 = vmatprep.subr.mxu0 0.0
    %255 = vmatpush1.msra.mxu0 0.0
    %256 = vmatprep.subr.mxu0 0.0
    %257 = vmatpush1.msra.mxu0 0.0
    %258 = vmatprep.subr.mxu0 0.0
    %259 = vmatpush1.msra.mxu0 0.0
    %260 = vmatprep.subr.mxu0 0.0
    %261 = vmatpush1.msra.mxu0 0.0
    %262 = vmatprep.subr.mxu0 0.0
    %263 = vmatpush1.msra.mxu0 0.0
    %264 = vmatprep.subr.mxu0 0.0
    %265 = vmatpush1.msra.mxu0 0.0
    %266 = vmatprep.subr.mxu0 0.0
    %267 = vmatpush1.msra.mxu0 0.0
    %268 = vmatprep.subr.mxu0 0.0
    %269 = vmatpush1.msra.mxu0 0.0
    %270 = vmatprep.subr.mxu0 0.0
    %271 = vmatpush1.msra.mxu0 0.0
    %272 = vmatprep.mubr.f32.mxu0 0.0
    %273 = vmatmul.mubr.f32.gmra.mrb[0].mxu0 %v190
    %v274 = vpop.f32.mrb[0].mxu0
    %v275 = vadd.f32 0.0, %v274
    %v276 = vpop.f32.mrb[0].mxu0
    %277 = vmatprep.mubr.f32.mxu0 0.0
    %278 = vmatmul.mubr.f32.gmra.mrb[0].mxu0 %v191
    %v279 = vpop.f32.mrb[0].mxu0
    %v280 = vadd.f32 0.0, %v279
    %v281 = vpop.f32.mrb[0].mxu0
    %282 = vdwg.mxu0
    %v283 = vld [vmem:[%s5] sm:$0x1]
    %v285 = vlaneseq
    %v286 = vshrl.u32 %v285, 7
    %v287 = vsub.s32 0, %v286
    %v288 = vrot.slane %v283, %v287
    %290 = vmatprep.subr.mxu0 0.0
    %291 = vmatpush1.msra.mxu0 %v275
    %292 = vmatprep.subr.mxu0 0.0
    %293 = vmatpush1.msra.mxu0 %v280
    %294 = vmatprep.subr.mxu0 0.0
    %295 = vmatpush1.msra.mxu0 0.0
    %296 = vmatprep.subr.mxu0 0.0
    %297 = vmatpush1.msra.mxu0 0.0
    %298 = vmatprep.subr.mxu0 0.0
    %299 = vmatpush1.msra.mxu0 0.0
    %300 = vmatprep.subr.mxu0 0.0
    %301 = vmatpush1.msra.mxu0 0.0
    %302 = vmatprep.subr.mxu0 0.0
    %303 = vmatpush1.msra.mxu0 0.0
    %304 = vmatprep.subr.mxu0 0.0
    %305 = vmatpush1.msra.mxu0 0.0
    %306 = vmatprep.subr.mxu0 0.0
    %307 = vmatpush1.msra.mxu0 0.0
    %308 = vmatprep.subr.mxu0 0.0
    %309 = vmatpush1.msra.mxu0 0.0
    %310 = vmatprep.subr.mxu0 0.0
    %311 = vmatpush1.msra.mxu0 0.0
    %312 = vmatprep.subr.mxu0 0.0
    %313 = vmatpush1.msra.mxu0 0.0
    %314 = vmatprep.subr.mxu0 0.0
    %315 = vmatpush1.msra.mxu0 0.0
    %316 = vmatprep.subr.mxu0 0.0
    %317 = vmatpush1.msra.mxu0 0.0
    %318 = vmatprep.subr.mxu0 0.0
    %319 = vmatpush1.msra.mxu0 0.0
    %320 = vmatprep.subr.mxu0 0.0
    %321 = vmatpush1.msra.mxu0 0.0
    %322 = vmatprep.subr.mxu0 0.0
    %323 = vmatpush1.msra.mxu0 0.0
    %324 = vmatprep.subr.mxu0 0.0
    %325 = vmatpush1.msra.mxu0 0.0
    %326 = vmatprep.subr.mxu0 0.0
    %327 = vmatpush1.msra.mxu0 0.0
    %328 = vmatprep.subr.mxu0 0.0
    %329 = vmatpush1.msra.mxu0 0.0
    %330 = vmatprep.subr.mxu0 0.0
    %331 = vmatpush1.msra.mxu0 0.0
    %332 = vmatprep.subr.mxu0 0.0
    %333 = vmatpush1.msra.mxu0 0.0
    %334 = vmatprep.subr.mxu0 0.0
    %335 = vmatpush1.msra.mxu0 0.0
    %336 = vmatprep.subr.mxu0 0.0
    %337 = vmatpush1.msra.mxu0 0.0
    %338 = vmatprep.subr.mxu0 0.0
    %339 = vmatpush1.msra.mxu0 0.0
    %340 = vmatprep.subr.mxu0 0.0
    %341 = vmatpush1.msra.mxu0 0.0
    %342 = vmatprep.subr.mxu0 0.0
    %343 = vmatpush1.msra.mxu0 0.0
    %344 = vmatprep.subr.mxu0 0.0
    %345 = vmatpush1.msra.mxu0 0.0
    %346 = vmatprep.subr.mxu0 0.0
    %347 = vmatpush1.msra.mxu0 0.0
    %348 = vmatprep.subr.mxu0 0.0
    %349 = vmatpush1.msra.mxu0 0.0
    %350 = vmatprep.subr.mxu0 0.0
    %351 = vmatpush1.msra.mxu0 0.0
    %352 = vmatprep.subr.mxu0 0.0
    %353 = vmatpush1.msra.mxu0 0.0
    %354 = vmatprep.mubr.f32.mxu0 0.0
    %355 = vmatmul.mubr.f32.gmra.mrb[0].mxu0 %v110
    %v356 = vpop.f32.mrb[0].mxu0
    %v357 = vadd.f32 %v288, %v356
    %v358 = vpop.f32.mrb[0].mxu0
    %359 = vmatprep.mubr.f32.mxu0 0.0
    %360 = vmatmul.mubr.f32.gmra.mrb[0].mxu0 %v113
    %v361 = vpop.f32.mrb[0].mxu0
    %v362 = vadd.f32 %v288, %v361
    %v363 = vpop.f32.mrb[0].mxu0
    %364 = vdwg.mxu0
    %v365 = vmax.f32 %v357, 0.0
    %v366 = vmax.f32 %v362, 0.0
    %v367 = vld [vmem:[%s6] sm:$0xff]
    %v369 = vsel %vm54, %v367, 0
    %371 = vmatprep.subr.mxu0 0.0
    %372 = vmatpush1.msra.mxu0 %v365
    %373 = vmatprep.subr.mxu0 0.0
    %374 = vmatpush1.msra.mxu0 %v366
    %375 = vmatprep.subr.mxu0 0.0
    %376 = vmatpush1.msra.mxu0 0.0
    %377 = vmatprep.subr.mxu0 0.0
    %378 = vmatpush1.msra.mxu0 0.0
    %379 = vmatprep.subr.mxu0 0.0
    %380 = vmatpush1.msra.mxu0 0.0
    %381 = vmatprep.subr.mxu0 0.0
    %382 = vmatpush1.msra.mxu0 0.0
    %383 = vmatprep.subr.mxu0 0.0
    %384 = vmatpush1.msra.mxu0 0.0
    %385 = vmatprep.subr.mxu0 0.0
    %386 = vmatpush1.msra.mxu0 0.0
    %387 = vmatprep.subr.mxu0 0.0
    %388 = vmatpush1.msra.mxu0 0.0
    %389 = vmatprep.subr.mxu0 0.0
    %390 = vmatpush1.msra.mxu0 0.0
    %391 = vmatprep.subr.mxu0 0.0
    %392 = vmatpush1.msra.mxu0 0.0
    %393 = vmatprep.subr.mxu0 0.0
    %394 = vmatpush1.msra.mxu0 0.0
    %395 = vmatprep.subr.mxu0 0.0
    %396 = vmatpush1.msra.mxu0 0.0
    %397 = vmatprep.subr.mxu0 0.0
    %398 = vmatpush1.msra.mxu0 0.0
    %399 = vmatprep.subr.mxu0 0.0
    %400 = vmatpush1.msra.mxu0 0.0
    %401 = vmatprep.subr.mxu0 0.0
    %402 = vmatpush1.msra.mxu0 0.0
    %403 = vmatprep.subr.mxu0 0.0
    %404 = vmatpush1.msra.mxu0 0.0
    %405 = vmatprep.subr.mxu0 0.0
    %406 = vmatpush1.msra.mxu0 0.0
    %407 = vmatprep.subr.mxu0 0.0
    %408 = vmatpush1.msra.mxu0 0.0
    %409 = vmatprep.subr.mxu0 0.0
    %410 = vmatpush1.msra.mxu0 0.0
    %411 = vmatprep.subr.mxu0 0.0
    %412 = vmatpush1.msra.mxu0 0.0
    %413 = vmatprep.subr.mxu0 0.0
    %414 = vmatpush1.msra.mxu0 0.0
    %415 = vmatprep.subr.mxu0 0.0
    %416 = vmatpush1.msra.mxu0 0.0
    %417 = vmatprep.subr.mxu0 0.0
    %418 = vmatpush1.msra.mxu0 0.0
    %419 = vmatprep.subr.mxu0 0.0
    %420 = vmatpush1.msra.mxu0 0.0
    %421 = vmatprep.subr.mxu0 0.0
    %422 = vmatpush1.msra.mxu0 0.0
    %423 = vmatprep.subr.mxu0 0.0
    %424 = vmatpush1.msra.mxu0 0.0
    %425 = vmatprep.subr.mxu0 0.0
    %426 = vmatpush1.msra.mxu0 0.0
    %427 = vmatprep.subr.mxu0 0.0
    %428 = vmatpush1.msra.mxu0 0.0
    %429 = vmatprep.subr.mxu0 0.0
    %430 = vmatpush1.msra.mxu0 0.0
    %431 = vmatprep.subr.mxu0 0.0
    %432 = vmatpush1.msra.mxu0 0.0
    %433 = vmatprep.subr.mxu0 0.0
    %434 = vmatpush1.msra.mxu0 0.0
    %435 = vmatprep.mubr.f32.mxu0 0.0
    %436 = vmatmul.mubr.f32.gmra.mrb[0].mxu0 %v369
    %v437 = vpop.f32.mrb[0].mxu0
    %v438 = vadd.f32 0.0, %v437
    %v439 = vpop.f32.mrb[0].mxu0
    %440 = vdwg.mxu0
    %v441 = vlaneseq
    %v442 = vand.u32 %v441, 127
    %vm443 = vcmp.lt.s32.totalorder %v442, 2
    %v444 = vsel %vm443, %v438, -1e+30
    %445 = vmax.xlane.f32.xlu0 %v444
    %v446 = vpop.xlane.xlu0 %445
    %v447 = vsub.f32 %v444, %v446
    %v448 = vmul.f32 %v447, 1.442695
    %v449 = vpow.pop %v448
    %v450 = vsel %vm443, %v449, 0.0
    %451 = vadd.xlane.f32.xlu0 %v450
    %v452 = vpop.xlane.xlu0 %451
    %v453 = vlog2.pop %v452
    %v454 = vmul.f32 %v453, 0.6931472
    %v455 = vadd.f32 %v446, %v454
    %v456 = vsub.f32 %v444, %v455
    %457 = vst [vmem:[%s7] sm:$0xff] %v456
    // Predicated region
    $region38: #{gcn_net_forward.1} parent=1 // pred_check
      _
    $region39: #{gcn_net_forward.1} parent=1 // pred_check_branch
      %459 = sbr.rel (0) target = $region41
    $region40: #{gcn_net_forward.1} parent=1 // pred_region
      _
    $region41: #{gcn_net_forward.1} parent=1 // pred_fallthru
      _
    // Predicated region
    $region42: #{gcn_net_forward.1} parent=1 // pred_check
      _
    $region43: #{gcn_net_forward.1} parent=1 // pred_check_branch
      %461 = sbr.rel (0) target = $region45
    $region44: #{gcn_net_forward.1} parent=1 // pred_region
      _
    $region45: #{gcn_net_forward.1} parent=1 // pred_fallthru
      _
    %462 = vsyncpa [#allocation3], 1
    %463 = vsyncpa [#allocation5], 1

</llo_original>
